<compile_context>
chip_gen: v5e
topology: v5e:2x2
jax: 0.10.0
libtpu: 0.0.40
codegen_flags: <defaults>
</compile_context>

<pallas_src>
import math

import jax
import jax.numpy as jnp
from jax.experimental import pallas as pl
from jax.experimental.pallas import tpu as pltpu

_SQRT2 = math.sqrt(2.0)


def _round_up(x, m):
    return ((x + m - 1) // m) * m


def _vmem_limit_bytes():
    # Size the scoped-VMEM request per TPU generation (v7x has only 64 MiB/TC,
    # v5e/v6e have 128 MiB).  Leave headroom, cap at 100 MiB.
    try:
        cap = pltpu.get_tpu_info().vmem_capacity_bytes
    except Exception:
        cap = 64 * 1024 * 1024
    return int(min(cap * 3 // 4, 100 * 1024 * 1024))


# ----------------------------------------------------------------------------
# Kernel builders: matmul + folded scale/bias + optional leaky-relu epilogue
# ----------------------------------------------------------------------------
def _build_kernel(has_bias, activation, scale_eff, multi_k):
    """scale_eff / bias already include lr_mul and (if activation) sqrt(2)."""

    def epilogue(acc, b_ref):
        out = acc * scale_eff
        if has_bias:
            out = out + b_ref[...]
        if activation:
            out = jnp.where(out >= 0.0, out, 0.2 * out)
        return out

    if multi_k:
        def kernel(*refs):
            if has_bias:
                x_ref, w_ref, b_ref, o_ref, acc_ref = refs
            else:
                x_ref, w_ref, o_ref, acc_ref = refs
                b_ref = None
            k = pl.program_id(2)

            @pl.when(k == 0)
            def _():
                acc_ref[...] = jnp.zeros_like(acc_ref)

            acc_ref[...] += jnp.dot(x_ref[...], w_ref[...],
                                    preferred_element_type=jnp.float32)

            @pl.when(k == pl.num_programs(2) - 1)
            def _():
                o_ref[...] = epilogue(acc_ref[...], b_ref).astype(o_ref.dtype)
    else:
        def kernel(*refs):
            if has_bias:
                x_ref, w_ref, b_ref, o_ref = refs
            else:
                x_ref, w_ref, o_ref = refs
                b_ref = None
            acc = jnp.dot(x_ref[...], w_ref[...],
                          preferred_element_type=jnp.float32)
            o_ref[...] = epilogue(acc, b_ref).astype(o_ref.dtype)

    return kernel


# ----------------------------------------------------------------------------
# Wrapper
# ----------------------------------------------------------------------------
def equal_linear(x, weight, bias=None, *, lr_mul=1.0, activation=None,
                 compute_dtype=None, out_dtype=None,
                 tm=512, tn=512, tk=1024):
    """Pallas TPU forward of EqualLinear.

    x: (..., in_dim);  weight: (out_dim, in_dim);  bias: (out_dim,) or None.
    compute_dtype: e.g. jnp.bfloat16 for the MXU operands (accumulation is f32).
    """
    out_dim, in_dim = weight.shape
    assert x.shape[-1] == in_dim
    scale = (1.0 / math.sqrt(in_dim)) * lr_mul

    activation = bool(activation)
    has_bias = bias is not None
    scale_eff = scale * (_SQRT2 if activation else 1.0)

    orig_lead = x.shape[:-1]
    x2 = x.reshape(-1, in_dim)
    M, K = x2.shape
    N = out_dim
    out_dtype = out_dtype or x.dtype

    # Lane-dense, MXU-friendly tiles (last dims multiples of 128, 2nd-to-last
    # of 8).  For typical EqualLinear shapes (N, K <= 512/1024) the whole
    # (padded) weight becomes a single resident VMEM block (tn==Np, tk==Kp).
    tm = min(tm, _round_up(M, 8))
    tn = min(tn, _round_up(N, 128))
    tk = min(tk, _round_up(K, 128))
    Mp, Kp, Np = _round_up(M, tm), _round_up(K, tk), _round_up(N, tn)

    x_p = x2 if (Mp == M and Kp == K) else jnp.pad(x2, ((0, Mp - M), (0, Kp - K)))
    # NOTE: weight.T / pads are cheap O(K*N) ops; cache them across calls in a
    # training/inference loop if the weight is static.
    w_t = weight.T                                                   # (K, N)
    if Kp != K or Np != N:
        w_t = jnp.pad(w_t, ((0, Kp - K), (0, Np - N)))
    if compute_dtype is not None:
        x_p = x_p.astype(compute_dtype)
        w_t = w_t.astype(compute_dtype)

    nk = Kp // tk
    multi_k = nk > 1
    operands = [x_p, w_t]

    if multi_k:
        # TODO(synk): for v7x an in-body K pipeline (pltpu.emit_pipeline) would
        # keep the accumulator in the MRB instead of a VMEM RMW per k step.
        in_specs = [pl.BlockSpec((tm, tk), lambda i, j, k: (i, k)),
                    pl.BlockSpec((tk, tn), lambda i, j, k: (k, j))]
        b_spec = pl.BlockSpec((1, tn), lambda i, j, k: (0, j))
        out_spec = pl.BlockSpec((tm, tn), lambda i, j, k: (i, j))
        grid = (Mp // tm, Np // tn, nk)
        scratch = [pltpu.VMEM((tm, tn), jnp.float32)]
        dims = ("parallel", "parallel", "arbitrary")
    else:
        in_specs = [pl.BlockSpec((tm, tk), lambda i, j: (i, 0)),
                    pl.BlockSpec((tk, tn), lambda i, j: (0, j))]
        b_spec = pl.BlockSpec((1, tn), lambda i, j: (0, j))
        out_spec = pl.BlockSpec((tm, tn), lambda i, j: (i, j))
        grid = (Mp // tm, Np // tn)
        scratch = []
        dims = ("parallel", "parallel")

    if has_bias:
        b_eff = bias.astype(jnp.float32) * lr_mul
        if activation:
            b_eff = b_eff * _SQRT2
        if Np != N:
            b_eff = jnp.pad(b_eff, (0, Np - N))
        operands.append(b_eff.reshape(1, Np))
        in_specs.append(b_spec)

    kernel = _build_kernel(has_bias, activation, scale_eff, multi_k)

    out = pl.pallas_call(
        kernel,
        out_shape=jax.ShapeDtypeStruct((Mp, Np), out_dtype),
        grid_spec=pltpu.PrefetchScalarGridSpec(
            num_scalar_prefetch=0,
            grid=grid,
            in_specs=in_specs,
            out_specs=out_spec,
            scratch_shapes=scratch,
        ),
        compiler_params=pltpu.CompilerParams(
            dimension_semantics=dims,
            vmem_limit_bytes=_vmem_limit_bytes(),
        ),
    )(*operands)

    if Mp != M or Np != N:
        out = out[:M, :N]
    return out.reshape(orig_lead + (out_dim,))


# ----------------------------------------------------------------------------
# Pure-JAX reference (mirrors the PyTorch forward), f32 HIGHEST precision
# ----------------------------------------------------------------------------
def reference_forward(x, weight, bias, *, lr_mul=1.0, activation=None):
    scale = (1.0 / math.sqrt(weight.shape[1])) * lr_mul
    out = jnp.einsum('...k,nk->...n', x, weight,
                     precision=jax.lax.Precision.HIGHEST) * scale
    if bias is not None:
        out = out + bias * lr_mul
    if activation:
        out = jnp.where(out >= 0.0, out, 0.2 * out) * _SQRT2
    return out


# ----------------------------------------------------------------------------
if __name__ == "__main__":
    key = jax.random.PRNGKey(0)

    def norm_err(a, b):
        return float(jnp.max(jnp.abs(a - b))) / (float(jnp.max(jnp.abs(b))) + 1e-6)

    # (x_shape, out_dim, lr_mul, activation, use_bias, extra kwargs)
    cases = [
        ((2, 8, 32), 32, 1.0, None, True, {}),                       # plain linear
        ((2, 8, 32), 32, 1.0, "fused_lrelu", True, {}),              # fused leaky-relu
        ((3, 5, 48), 40, 0.5, "fused_lrelu", True, {}),              # uneven shapes (padding path)
        ((2, 8, 300), 64, 1.0, None, False, dict(tk=128)),           # multi-K accumulator, no bias
    ]

    for idx, (xs, out_dim, lr_mul, act, use_bias, kwargs) in enumerate(cases):
        key, k_x, k_w, k_b = jax.random.split(key, 4)
        in_dim = xs[-1]
        x = jax.random.normal(k_x, xs, jnp.float32)
        weight = jax.random.normal(k_w, (out_dim, in_dim), jnp.float32) / lr_mul
        bias = 0.5 * jax.random.normal(k_b, (out_dim,), jnp.float32) if use_bias else None

        out = jax.block_until_ready(
            equal_linear(x, weight, bias, lr_mul=lr_mul, activation=act, **kwargs))
        ref = reference_forward(x, weight, bias, lr_mul=lr_mul, activation=act)

        assert out.shape == xs[:-1] + (out_dim,), (idx, out.shape)
        err = norm_err(out, ref)
        # Kernel uses the fast default-precision MXU path (bf16 operand
        # rounding, f32 accumulation); tolerance sized accordingly.
        assert err < 5e-2, f"case {idx}: normalized error too large: {err}"

    print("KERNEL_OK")
</pallas_src>

<mosaic_0001>
module attributes {stable_mosaic.version = 11 : i64} {
  func.func @kernel(%arg0: i32, %arg1: i32, %arg2: memref<16x128xf32, #tpu.memory_space<vmem>>, %arg3: memref<128x128xf32, #tpu.memory_space<vmem>>, %arg4: memref<1x128xf32, #tpu.memory_space<vmem>>, %arg5: memref<16x128xf32, #tpu.memory_space<vmem>>) attributes {dimension_semantics = [#tpu.dimension_semantics<parallel>, #tpu.dimension_semantics<parallel>], iteration_bounds = array<i64: 1, 1>, scalar_prefetch = 0 : i64, scratch_operands = 0 : i64, tpu.core_type = #tpu.core_type<tc>, window_params = [{transform_indices = @transform_0, window_bounds = array<i64: 16, 128>}, {transform_indices = @transform_1, window_bounds = array<i64: 128, 128>}, {transform_indices = @transform_2, window_bounds = array<i64: 1, 128>}, {transform_indices = @transform_3, window_bounds = array<i64: 16, 128>}]} {
    %c0 = arith.constant 0 : index
    %c0_0 = arith.constant 0 : index
    %0 = vector.load %arg2[%c0, %c0_0] : memref<16x128xf32, #tpu.memory_space<vmem>>, vector<16x128xf32>
    %c0_1 = arith.constant 0 : index
    %c0_2 = arith.constant 0 : index
    %1 = vector.load %arg3[%c0_1, %c0_2] : memref<128x128xf32, #tpu.memory_space<vmem>>, vector<128x128xf32>
    %cst = arith.constant dense<0.000000e+00> : vector<16x128xf32>
    %2 = tpu.matmul %0, %1, %cst {dimension_numbers = #tpu.dot_dimension_numbers<[1], [0], [0], [1], [0, 0, 1, 1], [], []>} : vector<16x128xf32>, vector<128x128xf32>, vector<16x128xf32> -> vector<16x128xf32>
    %cst_3 = arith.constant 0.176776692 : f32
    %3 = vector.broadcast %cst_3 : f32 to vector<16x128xf32>
    %4 = arith.mulf %2, %3 : vector<16x128xf32>
    %c0_4 = arith.constant 0 : index
    %c0_5 = arith.constant 0 : index
    %5 = vector.load %arg4[%c0_4, %c0_5] : memref<1x128xf32, #tpu.memory_space<vmem>>, vector<1x128xf32>
    %6 = vector.broadcast %5 : vector<1x128xf32> to vector<16x128xf32>
    %7 = arith.addf %4, %6 : vector<16x128xf32>
    %c0_6 = arith.constant 0 : index
    %c0_7 = arith.constant 0 : index
    %8 = vector.load %arg5[%c0_6, %c0_7] : memref<16x128xf32, #tpu.memory_space<vmem>>, vector<16x128xf32>
    tpu.vector_store %arg5[%c0_6, %c0_7], %7 {strides = array<i32>} : memref<16x128xf32, #tpu.memory_space<vmem>>, vector<16x128xf32>,
    return
  }
  func.func @transform_0(%arg0: i32, %arg1: i32) -> (i32, i32) {
    %c0_i32 = arith.constant 0 : i32
    %c0_i32_0 = arith.constant 0 : i32
    return %arg0, %c0_i32 : i32, i32
  }
  func.func @transform_1(%arg0: i32, %arg1: i32) -> (i32, i32) {
    %c0_i32 = arith.constant 0 : i32
    %c0_i32_0 = arith.constant 0 : i32
    return %c0_i32, %arg1 : i32, i32
  }
  func.func @transform_2(%arg0: i32, %arg1: i32) -> (i32, i32) {
    %c0_i32 = arith.constant 0 : i32
    %c0_i32_0 = arith.constant 0 : i32
    return %c0_i32, %arg1 : i32, i32
  }
  func.func @transform_3(%arg0: i32, %arg1: i32) -> (i32, i32) {
    %c0_i32 = arith.constant 0 : i32
    return %arg0, %arg1 : i32, i32
  }
}

</mosaic_0001>

<llo_original>
// kernel: tpu_custom_call.1
$region0: #{tpu_custom_call.1}
  #allocation0 [shape = 'u32[]', space=smem, size = 0x4, offset = 0x4, fixed_abs, tag = 'smem constant byte address 0x4 - core index']
  #allocation1 [shape = 'u32[72,128]{1,0:T(1,128)}', space=vmem, size = 0x9000, scoped, tag = 'internal scratch']
  %s0 = inlined_call_operand.hbm [shape: f32[16,128], index: 0, kind: input, shape index: {}]
  %s1 = inlined_call_operand.hbm [shape: f32[128,128], index: 1, kind: input, shape index: {}]
  %s2 = inlined_call_operand.vmem [shape: f32[1,128], index: 2, kind: input, shape index: {}]
  %s3 = inlined_call_operand.hbm [shape: f32[16,128], index: 3, kind: output, shape index: {}]
  %s4 = sld [smem:[#allocation0]]
  $region30: #{tpu_custom_call.1} parent=0
    _
  %s6 = ssub.s32 1, %s4
  %s7 = scalar_select 0, %s6, %s4
  $region1: #{tpu_custom_call.1} parent=0
    #allocation2 [shape = 'u8[8192]{0}', space=vmem, size = 0x2000, scoped, tag = 'input window, operand 0, single buffered']
    #allocation3 [shape = 's32[1]{0}', space=sflag, size = 0x4, scoped, tag = 'scoped memory for tpu_custom_call.1']
    #allocation4 [shape = 's32[1]{0}', space=sflag, size = 0x4, scoped, tag = 'scoped memory for tpu_custom_call.1']
    #allocation5 [shape = 'u8[65536]{0}', space=vmem, size = 0x10000, scoped, tag = 'input window, operand 1, single buffered']
    #allocation6 [shape = 's32[1]{0}', space=sflag, size = 0x4, scoped, tag = 'scoped memory for tpu_custom_call.1']
    #allocation7 [shape = 'u8[8192]{0}', space=vmem, size = 0x2000, scoped, tag = 'output window, operand 0, single buffered']
    %8 = vsyncpa [#allocation3], 0
    %9 = vsyncpa [#allocation6], 0
    %10 = vsyncpa [#allocation4], 0
    // Predicated region
    $region2: #{tpu_custom_call.1} parent=1 // pred_check
      _
    $region3: #{tpu_custom_call.1} parent=1 // pred_check_branch
      %12 = sbr.rel (0) target = $region5
    $region4: #{tpu_custom_call.1} parent=1 // pred_region
      %14 = vsyncadd [#allocation3], 0
      %s15 = sshll.u32 %s0, 4
      %s16 = int_to_ptr.hbm [resolvable:$true] %s15
      %s17 = sshll.u32 [#allocation2], 4
      %s18 = int_to_ptr.vmem [resolvable:$true] %s17
      %23 = dma.hbm_to_vmem [thread:$0]  %s16, 256, %s18, [#allocation3], 128, 128, 8
    $region5: #{tpu_custom_call.1} parent=1 // pred_fallthru
      _
    // Predicated region
    $region6: #{tpu_custom_call.1} parent=1 // pred_check
      _
    $region7: #{tpu_custom_call.1} parent=1 // pred_check_branch
      %25 = sbr.rel (0) target = $region9
    $region8: #{tpu_custom_call.1} parent=1 // pred_region
      %27 = vsyncadd [#allocation6], 0
      %s28 = sshll.u32 %s1, 4
      %s29 = int_to_ptr.hbm [resolvable:$true] %s28
      %s30 = sshll.u32 [#allocation5], 4
      %s31 = int_to_ptr.vmem [resolvable:$true] %s30
      %36 = dma.hbm_to_vmem [thread:$0]  %s29, 2048, %s31, [#allocation6], 128, 128, 8
    $region9: #{tpu_custom_call.1} parent=1 // pred_fallthru
      _
    // Predicated region
    $region10: #{tpu_custom_call.1} parent=1 // pred_check
      _
    $region11: #{tpu_custom_call.1} parent=1 // pred_check_branch
      %38 = sbr.rel (0) target = $region13
    $region12: #{tpu_custom_call.1} parent=1 // pred_region
      _
    $region13: #{tpu_custom_call.1} parent=1 // pred_fallthru
      _
    // Predicated region
    $region14: #{tpu_custom_call.1} parent=1 // pred_check
      _
    $region15: #{tpu_custom_call.1} parent=1 // pred_check_branch
      %40 = sbr.rel (0) target = $region17
    $region16: #{tpu_custom_call.1} parent=1 // pred_region
      %42 = dma.done [#allocation3], 256
    $region17: #{tpu_custom_call.1} parent=1 // pred_fallthru
      _
    // Predicated region
    $region18: #{tpu_custom_call.1} parent=1 // pred_check
      _
    $region19: #{tpu_custom_call.1} parent=1 // pred_check_branch
      %44 = sbr.rel (0) target = $region21
    $region20: #{tpu_custom_call.1} parent=1 // pred_region
      %46 = dma.done [#allocation6], 2048
    $region21: #{tpu_custom_call.1} parent=1 // pred_fallthru
      _
    %v47 = vld [vmem:[#allocation2] sm:$0xff]
    %v48 = vld [vmem:[#allocation2 + $0x8] sm:$0xff]
    %v49 = vld [vmem:[#allocation5] sm:$0xff]
    %v50 = vld [vmem:[#allocation5 + $0x8] sm:$0xff]
    %v51 = vld [vmem:[#allocation5 + $0x10] sm:$0xff]
    %v52 = vld [vmem:[#allocation5 + $0x18] sm:$0xff]
    %v53 = vld [vmem:[#allocation5 + $0x20] sm:$0xff]
    %v54 = vld [vmem:[#allocation5 + $0x28] sm:$0xff]
    %v55 = vld [vmem:[#allocation5 + $0x30] sm:$0xff]
    %v56 = vld [vmem:[#allocation5 + $0x38] sm:$0xff]
    %v57 = vld [vmem:[#allocation5 + $0x40] sm:$0xff]
    %v58 = vld [vmem:[#allocation5 + $0x48] sm:$0xff]
    %v59 = vld [vmem:[#allocation5 + $0x50] sm:$0xff]
    %v60 = vld [vmem:[#allocation5 + $0x58] sm:$0xff]
    %v61 = vld [vmem:[#allocation5 + $0x60] sm:$0xff]
    %v62 = vld [vmem:[#allocation5 + $0x68] sm:$0xff]
    %v63 = vld [vmem:[#allocation5 + $0x70] sm:$0xff]
    %v64 = vld [vmem:[#allocation5 + $0x78] sm:$0xff]
    %65 = vmatpush.msra.mxu0 %v64
    %66 = vmatpush.msra.mxu0 %v63
    %67 = vmatpush.msra.mxu0 %v62
    %68 = vmatpush.msra.mxu0 %v61
    %69 = vmatpush.msra.mxu0 %v60
    %70 = vmatpush.msra.mxu0 %v59
    %71 = vmatpush.msra.mxu0 %v58
    %72 = vmatpush.msra.mxu0 %v57
    %73 = vmatpush.msra.mxu0 %v56
    %74 = vmatpush.msra.mxu0 %v55
    %75 = vmatpush.msra.mxu0 %v54
    %76 = vmatpush.msra.mxu0 %v53
    %77 = vmatpush.msra.mxu0 %v52
    %78 = vmatpush.msra.mxu0 %v51
    %79 = vmatpush.msra.mxu0 %v50
    %80 = vmatpush.msra.mxu0 %v49
    %81 = vmatmul.f32.gmra.mxu0 %v47
    %v82 = vpop.f32.mrf.mxu0
    %v83 = vadd.f32 0.0, %v82
    %84 = vmatmul.f32.gmra.mxu0 %v48
    %v85 = vpop.f32.mrf.mxu0
    %v86 = vadd.f32 0.0, %v85
    %87 = vdwg.mxu0
    %v88 = vmul.f32 %v83, 0.17677669
    %v89 = vmul.f32 %v86, 0.17677669
    %v90 = vld [vmem:[%s2] sm:$0x1]
    %v92 = vperm.slane %v90, 0
    %v94 = vadd.f32 %v88, %v92
    %v95 = vadd.f32 %v89, %v92
    %96 = vst [vmem:[#allocation7] sm:$0xff] %v94
    %97 = vst [vmem:[#allocation7 + $0x8] sm:$0xff] %v95
    // Predicated region
    $region22: #{tpu_custom_call.1} parent=1 // pred_check
      _
    $region23: #{tpu_custom_call.1} parent=1 // pred_check_branch
      %99 = sbr.rel (0) target = $region25
    $region24: #{tpu_custom_call.1} parent=1 // pred_region
      %101 = vsyncadd [#allocation4], 0
      %s102 = sshll.u32 [#allocation7], 4
      %s103 = int_to_ptr.vmem [resolvable:$true] %s102
      %s104 = sshll.u32 %s3, 4
      %s105 = int_to_ptr.hbm [resolvable:$true] %s104
      %110 = dma.vmem_to_hbm [thread:$0]  %s103, 256, %s105, [#allocation4], 128, 128, 8
    $region25: #{tpu_custom_call.1} parent=1 // pred_fallthru
      _
    // Predicated region
    $region26: #{tpu_custom_call.1} parent=1 // pred_check
      _
    $region27: #{tpu_custom_call.1} parent=1 // pred_check_branch
      %112 = sbr.rel (0) target = $region29
    $region28: #{tpu_custom_call.1} parent=1 // pred_region
      %114 = dma.done [#allocation4], 256
    $region29: #{tpu_custom_call.1} parent=1 // pred_fallthru
      _
    %115 = vsyncpa [#allocation3], 1
    %116 = vsyncpa [#allocation6], 1
    %117 = vsyncpa [#allocation4], 1

</llo_original>
